<compile_context>
chip_gen: v6e
topology: v6e:2x2x1
jax: 0.10.0
libtpu: 0.0.40
codegen_flags: <defaults>
</compile_context>

<pallas_src>
import math

import jax
import jax.numpy as jnp
from jax.experimental import pallas as pl
from jax.experimental.pallas import tpu as pltpu

BN_EPS = 1e-5
NUM_CLASSES = 100
F_HALF = 100            # width of each bottom-model output
NEG_BIG = -1e30


def _round_up(x, m):
    return ((x + m - 1) // m) * m


# ----------------------------------------------------------------------------
# Kernel
# ----------------------------------------------------------------------------
def top_model_kernel(a_ref, b_ref, w1_ref, w2_ref, w3_ref, w4_ref, vec_ref,
                     out_ref):
    vec = vec_ref[...]                   # (8, 256) f32: bn0 scale/shift + biases
    s0a, s0b = vec[0:1, 0:128], vec[0:1, 128:256]
    t0a, t0b = vec[1:2, 0:128], vec[1:2, 128:256]
    b1 = vec[2:3, :]                     # (1, 256)
    b2 = vec[3:4, 0:128]
    b3 = vec[4:5, 0:128]
    b4 = vec[5:6, 0:128]

    # bn0 (folded affine) + relu, in f32 (inputs arrive bf16, lanes>=100 zero).
    ra = jnp.maximum(a_ref[...].astype(jnp.float32) * s0a + t0a, 0.0)
    rb = jnp.maximum(b_ref[...].astype(jnp.float32) * s0b + t0b, 0.0)

    # Concatenate at the 128-lane boundary (pure vreg placement), cast to bf16.
    x = jnp.concatenate([ra, rb], axis=1).astype(jnp.bfloat16)   # (TB, 256)

    # fc1 (+ folded bn1): single fused K=256 bf16 matmul, f32 accumulation.
    h1 = jnp.dot(x, w1_ref[...], preferred_element_type=jnp.float32) + b1
    r1 = jnp.maximum(h1, 0.0).astype(jnp.bfloat16)               # (TB, 256)

    # fc2 (+ folded bn2) + relu
    h2 = jnp.dot(r1, w2_ref[...], preferred_element_type=jnp.float32) + b2
    r2 = jnp.maximum(h2, 0.0).astype(jnp.bfloat16)               # (TB, 128)

    # fc3 (+ folded bn3) + relu
    h3 = jnp.dot(r2, w3_ref[...], preferred_element_type=jnp.float32) + b3
    r3 = jnp.maximum(h3, 0.0).astype(jnp.bfloat16)               # (TB, 128)

    # fc4
    logits = jnp.dot(r3, w4_ref[...], preferred_element_type=jnp.float32) + b4

    # Exclude padded lanes (>= NUM_CLASSES) from the log_softmax normalizer.
    lane = jax.lax.broadcasted_iota(jnp.int32, logits.shape, 1)
    logits = jnp.where(lane < NUM_CLASSES, logits, NEG_BIG)

    shifted = logits - jnp.max(logits, axis=1, keepdims=True)
    lse = jnp.log(jnp.sum(jnp.exp(shifted), axis=1, keepdims=True))
    out_ref[...] = (shifted - lse)[:, :NUM_CLASSES]


# ----------------------------------------------------------------------------
# Parameters (PyTorch-equivalent layout) and host-side folding / packing
# ----------------------------------------------------------------------------
def init_params(key):
    """Raw params matching TopModelForCifar100: Linear (out,in) kaiming-normal
    weights, default-uniform biases, BatchNorm1d eval-mode defaults."""
    ks = jax.random.split(key, 8)

    def linear(kw, kb, out_f, in_f):
        std = math.sqrt(2.0 / in_f)                      # kaiming_normal_, fan_in
        w = jax.random.normal(kw, (out_f, in_f), jnp.float32) * std
        bound = 1.0 / math.sqrt(in_f)                    # nn.Linear default bias
        b = jax.random.uniform(kb, (out_f,), jnp.float32, -bound, bound)
        return w, b

    def bn(dim):
        # (gamma, beta, running_mean, running_var)
        return (jnp.ones((dim,), jnp.float32), jnp.zeros((dim,), jnp.float32),
                jnp.zeros((dim,), jnp.float32), jnp.ones((dim,), jnp.float32))

    w1, b1 = linear(ks[0], ks[1], 200, 200)
    w2, b2 = linear(ks[2], ks[3], 100, 200)
    w3, b3 = linear(ks[4], ks[5], 100, 100)
    w4, b4 = linear(ks[6], ks[7], 100, 100)
    return dict(w1=w1, b1=b1, w2=w2, b2=b2, w3=w3, b3=b3, w4=w4, b4=b4,
                bn0=bn(200), bn1=bn(200), bn2=bn(100), bn3=bn(100))


def pack_params(p):
    """Fold eval-mode BatchNorm into affine scale/shift (bn0) and into the
    preceding Linear (bn1..bn3); pad to 128-lane multiples, store weights in
    bf16 and the small vectors in a single (8, 256) f32 slab."""
    def fold(gamma, beta, mean, var):
        s = gamma * jax.lax.rsqrt(var + BN_EPS)
        return s, beta - mean * s

    s0, t0 = fold(*p["bn0"])      # (200,)
    s1, t1 = fold(*p["bn1"])      # (200,)
    s2, t2 = fold(*p["bn2"])      # (100,)
    s3, t3 = fold(*p["bn3"])      # (100,)

    # BN(x @ W.T + b) == x @ (W.T * s) + (b * s + t)
    w1 = p["w1"].T * s1[None, :]          # (200, 200)  in x out
    b1 = p["b1"] * s1 + t1
    w2 = p["w2"].T * s2[None, :]          # (200, 100)
    b2 = p["b2"] * s2 + t2
    w3 = p["w3"].T * s3[None, :]          # (100, 100)
    b3 = p["b3"] * s3 + t3
    w4 = p["w4"].T                        # (100, 100)
    b4 = p["b4"]

    # Fused fc1 weight for the [ra(128 lanes) | rb(128 lanes)] activation layout.
    w1p = jnp.zeros((256, 256), jnp.float32)
    w1p = w1p.at[0:F_HALF, 0:200].set(w1[:F_HALF])
    w1p = w1p.at[128:128 + F_HALF, 0:200].set(w1[F_HALF:])

    w2p = jnp.zeros((256, 128), jnp.float32).at[0:200, 0:100].set(w2)
    w3p = jnp.zeros((128, 128), jnp.float32).at[0:100, 0:100].set(w3)
    w4p = jnp.zeros((128, 128), jnp.float32).at[0:100, 0:100].set(w4)

    def pad1(v, n):
        return jnp.pad(v, (0, n - v.shape[0]))

    vec = jnp.zeros((8, 256), jnp.float32)
    vec = vec.at[0, :].set(jnp.concatenate([pad1(s0[:F_HALF], 128),
                                            pad1(s0[F_HALF:], 128)]))
    vec = vec.at[1, :].set(jnp.concatenate([pad1(t0[:F_HALF], 128),
                                            pad1(t0[F_HALF:], 128)]))
    vec = vec.at[2, :].set(pad1(b1, 256))
    vec = vec.at[3, :128].set(pad1(b2, 128))
    vec = vec.at[4, :128].set(pad1(b3, 128))
    vec = vec.at[5, :128].set(pad1(b4, 128))

    bf = jnp.bfloat16
    return dict(w1=w1p.astype(bf), w2=w2p.astype(bf), w3=w3p.astype(bf),
                w4=w4p.astype(bf), vec=vec)


# ----------------------------------------------------------------------------
# Wrapper
# ----------------------------------------------------------------------------
def top_model_forward(packed, input_a, input_b, *, block_b=512):
    B, f_in = input_a.shape               # f_in == 100

    # Batch tile: multiple of 16 (bf16 sublane packing).  Ensure >= 2 grid
    # steps whenever possible so the "parallel" axis shards across both
    # TensorCores on v7x; otherwise use block_b and pipeline over the batch.
    block_b = max(16, (block_b // 16) * 16)
    bp0 = _round_up(B, 16)
    if bp0 >= 2 * block_b:
        tb = block_b
    else:
        tb = min(block_b, max(16, _round_up(bp0 // 2, 16)))
    bp = _round_up(B, tb)

    def prep(x):
        # One fused XLA pass per input: zero-pad (B,100) -> (bp,128), cast bf16.
        return jnp.pad(x, ((0, bp - B), (0, 128 - f_in))).astype(jnp.bfloat16)

    a = prep(input_a)
    b = prep(input_b)

    act_spec = pl.BlockSpec((tb, 128), lambda i: (i, 0))

    def resident(shape):
        # Same block every grid step -> weights stay in VMEM, DMA'd once.
        return pl.BlockSpec(shape, lambda i: (0, 0))

    out = pl.pallas_call(
        top_model_kernel,
        out_shape=jax.ShapeDtypeStruct((bp, NUM_CLASSES), jnp.float32),
        grid=(bp // tb,),
        in_specs=[
            act_spec,                 # input half a (bf16, lane-padded)
            act_spec,                 # input half b
            resident((256, 256)),     # fused fc1 weight (bf16)
            resident((256, 128)),     # fc2 (bf16)
            resident((128, 128)),     # fc3 (bf16)
            resident((128, 128)),     # fc4 (bf16)
            resident((8, 256)),       # packed bn0 scale/shift + biases (f32)
        ],
        out_specs=pl.BlockSpec((tb, NUM_CLASSES), lambda i: (i, 0)),
        compiler_params=pltpu.CompilerParams(
            dimension_semantics=("parallel",),
            vmem_limit_bytes=32 * 1024 * 1024),
    )(a, b, packed["w1"], packed["w2"], packed["w3"], packed["w4"],
      packed["vec"])

    return out if bp == B else out[:B]


# ----------------------------------------------------------------------------
# Pure-JAX reference (mirrors the PyTorch forward, eval-mode BN, f32)
# ----------------------------------------------------------------------------
def reference_forward(params, a, b):
    x = jnp.concatenate([a, b], axis=1)

    def bn(x, p):
        gamma, beta, mean, var = p
        return (x - mean) * gamma / jnp.sqrt(var + BN_EPS) + beta

    def lin(x, w, bias):
        return x @ w.T + bias

    x = lin(jax.nn.relu(bn(x, params["bn0"])), params["w1"], params["b1"])
    x = lin(jax.nn.relu(bn(x, params["bn1"])), params["w2"], params["b2"])
    x = lin(jax.nn.relu(bn(x, params["bn2"])), params["w3"], params["b3"])
    x = lin(jax.nn.relu(bn(x, params["bn3"])), params["w4"], params["b4"])
    return jax.nn.log_softmax(x, axis=1)


if __name__ == "__main__":
    key = jax.random.PRNGKey(0)
    k_param, k_a, k_b = jax.random.split(key, 3)

    params = init_params(k_param)
    packed = pack_params(params)

    B = 8
    input_a = jax.random.normal(k_a, (B, F_HALF), jnp.float32)
    input_b = jax.random.normal(k_b, (B, F_HALF), jnp.float32)

    out = jax.block_until_ready(top_model_forward(packed, input_a, input_b))
    assert out.shape == (B, NUM_CLASSES)

    # Numerical check against the un-folded f32 reference (bf16 MXU -> looser tol).
    ref = reference_forward(params, input_a, input_b)
    max_err = float(jnp.max(jnp.abs(out - ref)))
    assert max_err < 1e-1, f"kernel vs reference max |diff| = {max_err}"
    # log_softmax rows should exp-sum to 1 (computed in f32 inside the kernel).
    assert bool(jnp.all(jnp.abs(jnp.sum(jnp.exp(out), axis=1) - 1.0) < 1e-3))

    # TODO(synk): training-mode BatchNorm (batch statistics + running-stat
    # updates) is not implemented; the kernel uses eval-mode running stats.
    print("KERNEL_OK")
</pallas_src>

<mosaic_0001>
module attributes {stable_mosaic.version = 11 : i64} {
  func.func @top_model_kernel(%arg0: i32, %arg1: memref<16x128xbf16, #tpu.memory_space<vmem>>, %arg2: memref<16x128xbf16, #tpu.memory_space<vmem>>, %arg3: memref<256x256xbf16, #tpu.memory_space<vmem>>, %arg4: memref<256x128xbf16, #tpu.memory_space<vmem>>, %arg5: memref<128x128xbf16, #tpu.memory_space<vmem>>, %arg6: memref<128x128xbf16, #tpu.memory_space<vmem>>, %arg7: memref<8x256xf32, #tpu.memory_space<vmem>>, %arg8: memref<16x100xf32, #tpu.memory_space<vmem>>) attributes {dimension_semantics = [#tpu.dimension_semantics<parallel>], iteration_bounds = array<i64: 1>, scalar_prefetch = 0 : i64, scratch_operands = 0 : i64, tpu.core_type = #tpu.core_type<tc>, window_params = [{transform_indices = @transform_0, window_bounds = array<i64: 16, 128>}, {transform_indices = @transform_1, window_bounds = array<i64: 16, 128>}, {pipeline_mode = #tpu.pipeline_mode<synchronous>, transform_indices = @transform_2, window_bounds = array<i64: 256, 256>}, {pipeline_mode = #tpu.pipeline_mode<synchronous>, transform_indices = @transform_3, window_bounds = array<i64: 256, 128>}, {pipeline_mode = #tpu.pipeline_mode<synchronous>, transform_indices = @transform_4, window_bounds = array<i64: 128, 128>}, {pipeline_mode = #tpu.pipeline_mode<synchronous>, transform_indices = @transform_5, window_bounds = array<i64: 128, 128>}, {pipeline_mode = #tpu.pipeline_mode<synchronous>, transform_indices = @transform_6, window_bounds = array<i64: 8, 256>}, {transform_indices = @transform_7, window_bounds = array<i64: 16, 100>}]} {
    %c0 = arith.constant 0 : index
    %c0_0 = arith.constant 0 : index
    %0 = vector.load %arg7[%c0, %c0_0] : memref<8x256xf32, #tpu.memory_space<vmem>>, vector<8x256xf32>
    %1 = vector.extract_strided_slice %0 {offsets = [0, 0], sizes = [1, 128], strides = [1, 1]} : vector<8x256xf32> to vector<1x128xf32>
    %2 = vector.extract_strided_slice %0 {offsets = [0, 128], sizes = [1, 128], strides = [1, 1]} : vector<8x256xf32> to vector<1x128xf32>
    %3 = vector.extract_strided_slice %0 {offsets = [1, 0], sizes = [1, 128], strides = [1, 1]} : vector<8x256xf32> to vector<1x128xf32>
    %4 = vector.extract_strided_slice %0 {offsets = [1, 128], sizes = [1, 128], strides = [1, 1]} : vector<8x256xf32> to vector<1x128xf32>
    %5 = vector.extract_strided_slice %0 {offsets = [2, 0], sizes = [1, 256], strides = [1, 1]} : vector<8x256xf32> to vector<1x256xf32>
    %6 = vector.extract_strided_slice %0 {offsets = [3, 0], sizes = [1, 128], strides = [1, 1]} : vector<8x256xf32> to vector<1x128xf32>
    %7 = vector.extract_strided_slice %0 {offsets = [4, 0], sizes = [1, 128], strides = [1, 1]} : vector<8x256xf32> to vector<1x128xf32>
    %8 = vector.extract_strided_slice %0 {offsets = [5, 0], sizes = [1, 128], strides = [1, 1]} : vector<8x256xf32> to vector<1x128xf32>
    %c0_1 = arith.constant 0 : index
    %c0_2 = arith.constant 0 : index
    %9 = vector.load %arg1[%c0_1, %c0_2] : memref<16x128xbf16, #tpu.memory_space<vmem>>, vector<16x128xbf16>
    %10 = arith.extf %9 : vector<16x128xbf16> to vector<16x128xf32>
    %11 = vector.broadcast %1 : vector<1x128xf32> to vector<16x128xf32>
    %12 = arith.mulf %10, %11 : vector<16x128xf32>
    %13 = vector.broadcast %3 : vector<1x128xf32> to vector<16x128xf32>
    %14 = arith.addf %12, %13 : vector<16x128xf32>
    %cst = arith.constant 0.000000e+00 : f32
    %15 = vector.broadcast %cst : f32 to vector<16x128xf32>
    %16 = arith.maximumf %14, %15 : vector<16x128xf32>
    %c0_3 = arith.constant 0 : index
    %c0_4 = arith.constant 0 : index
    %17 = vector.load %arg2[%c0_3, %c0_4] : memref<16x128xbf16, #tpu.memory_space<vmem>>, vector<16x128xbf16>
    %18 = arith.extf %17 : vector<16x128xbf16> to vector<16x128xf32>
    %19 = vector.broadcast %2 : vector<1x128xf32> to vector<16x128xf32>
    %20 = arith.mulf %18, %19 : vector<16x128xf32>
    %21 = vector.broadcast %4 : vector<1x128xf32> to vector<16x128xf32>
    %22 = arith.addf %20, %21 : vector<16x128xf32>
    %cst_5 = arith.constant 0.000000e+00 : f32
    %23 = vector.broadcast %cst_5 : f32 to vector<16x128xf32>
    %24 = arith.maximumf %22, %23 : vector<16x128xf32>
    %25 = tpu.concatenate %16, %24 in 1 : vector<16x128xf32>, vector<16x128xf32> -> vector<16x256xf32>
    %26 = arith.truncf %25 : vector<16x256xf32> to vector<16x256xbf16>
    %c0_6 = arith.constant 0 : index
    %c0_7 = arith.constant 0 : index
    %27 = vector.load %arg3[%c0_6, %c0_7] : memref<256x256xbf16, #tpu.memory_space<vmem>>, vector<256x256xbf16>
    %cst_8 = arith.constant dense<0.000000e+00> : vector<16x256xf32>
    %28 = tpu.matmul %26, %27, %cst_8 {dimension_numbers = #tpu.dot_dimension_numbers<[1], [0], [0], [1], [0, 0, 1, 1], [], []>} : vector<16x256xbf16>, vector<256x256xbf16>, vector<16x256xf32> -> vector<16x256xf32>
    %29 = vector.broadcast %5 : vector<1x256xf32> to vector<16x256xf32>
    %30 = arith.addf %28, %29 : vector<16x256xf32>
    %cst_9 = arith.constant 0.000000e+00 : f32
    %31 = vector.broadcast %cst_9 : f32 to vector<16x256xf32>
    %32 = arith.maximumf %30, %31 : vector<16x256xf32>
    %33 = arith.truncf %32 : vector<16x256xf32> to vector<16x256xbf16>
    %c0_10 = arith.constant 0 : index
    %c0_11 = arith.constant 0 : index
    %34 = vector.load %arg4[%c0_10, %c0_11] : memref<256x128xbf16, #tpu.memory_space<vmem>>, vector<256x128xbf16>
    %cst_12 = arith.constant dense<0.000000e+00> : vector<16x128xf32>
    %35 = tpu.matmul %33, %34, %cst_12 {dimension_numbers = #tpu.dot_dimension_numbers<[1], [0], [0], [1], [0, 0, 1, 1], [], []>} : vector<16x256xbf16>, vector<256x128xbf16>, vector<16x128xf32> -> vector<16x128xf32>
    %36 = vector.broadcast %6 : vector<1x128xf32> to vector<16x128xf32>
    %37 = arith.addf %35, %36 : vector<16x128xf32>
    %cst_13 = arith.constant 0.000000e+00 : f32
    %38 = vector.broadcast %cst_13 : f32 to vector<16x128xf32>
    %39 = arith.maximumf %37, %38 : vector<16x128xf32>
    %40 = arith.truncf %39 : vector<16x128xf32> to vector<16x128xbf16>
    %c0_14 = arith.constant 0 : index
    %c0_15 = arith.constant 0 : index
    %41 = vector.load %arg5[%c0_14, %c0_15] : memref<128x128xbf16, #tpu.memory_space<vmem>>, vector<128x128xbf16>
    %cst_16 = arith.constant dense<0.000000e+00> : vector<16x128xf32>
    %42 = tpu.matmul %40, %41, %cst_16 {dimension_numbers = #tpu.dot_dimension_numbers<[1], [0], [0], [1], [0, 0, 1, 1], [], []>} : vector<16x128xbf16>, vector<128x128xbf16>, vector<16x128xf32> -> vector<16x128xf32>
    %43 = vector.broadcast %7 : vector<1x128xf32> to vector<16x128xf32>
    %44 = arith.addf %42, %43 : vector<16x128xf32>
    %cst_17 = arith.constant 0.000000e+00 : f32
    %45 = vector.broadcast %cst_17 : f32 to vector<16x128xf32>
    %46 = arith.maximumf %44, %45 : vector<16x128xf32>
    %47 = arith.truncf %46 : vector<16x128xf32> to vector<16x128xbf16>
    %c0_18 = arith.constant 0 : index
    %c0_19 = arith.constant 0 : index
    %48 = vector.load %arg6[%c0_18, %c0_19] : memref<128x128xbf16, #tpu.memory_space<vmem>>, vector<128x128xbf16>
    %cst_20 = arith.constant dense<0.000000e+00> : vector<16x128xf32>
    %49 = tpu.matmul %47, %48, %cst_20 {dimension_numbers = #tpu.dot_dimension_numbers<[1], [0], [0], [1], [0, 0, 1, 1], [], []>} : vector<16x128xbf16>, vector<128x128xbf16>, vector<16x128xf32> -> vector<16x128xf32>
    %50 = vector.broadcast %8 : vector<1x128xf32> to vector<16x128xf32>
    %51 = arith.addf %49, %50 : vector<16x128xf32>
    %52 = tpu.iota {dimensions = array<i32: 1>} : vector<16x128xi32>
    %c100_i32 = arith.constant 100 : i32
    %53 = vector.broadcast %c100_i32 : i32 to vector<16x128xi32>
    %54 = arith.cmpi slt, %52, %53 : vector<16x128xi32>
    %cst_21 = arith.constant -1.000000e+30 : f32
    %55 = vector.broadcast %cst_21 : f32 to vector<16x128xf32>
    %56 = arith.select %54, %51, %55 : vector<16x128xi1>, vector<16x128xf32>
    %cst_22 = arith.constant dense<0xFF800000> : vector<16xf32>
    %57 = vector.multi_reduction <maximumf>, %56, %cst_22 [1] : vector<16x128xf32> to vector<16xf32>
    %58 = vector.shape_cast %57 : vector<16xf32> to vector<16x1xf32>
    %59 = vector.broadcast %58 : vector<16x1xf32> to vector<16x128xf32>
    %60 = arith.subf %56, %59 : vector<16x128xf32>
    %61 = math.exp %60 : vector<16x128xf32>
    %cst_23 = arith.constant dense<0.000000e+00> : vector<16xf32>
    %62 = vector.multi_reduction <add>, %61, %cst_23 [1] : vector<16x128xf32> to vector<16xf32>
    %63 = vector.shape_cast %62 : vector<16xf32> to vector<16x1xf32>
    %64 = math.log %63 : vector<16x1xf32>
    %65 = vector.broadcast %64 : vector<16x1xf32> to vector<16x128xf32>
    %66 = arith.subf %60, %65 : vector<16x128xf32>
    %67 = vector.extract_strided_slice %66 {offsets = [0, 0], sizes = [16, 100], strides = [1, 1]} : vector<16x128xf32> to vector<16x100xf32>
    %c0_24 = arith.constant 0 : index
    %c0_25 = arith.constant 0 : index
    %68 = vector.load %arg8[%c0_24, %c0_25] : memref<16x100xf32, #tpu.memory_space<vmem>>, vector<16x100xf32>
    tpu.vector_store %arg8[%c0_24, %c0_25], %67 {strides = array<i32>} : memref<16x100xf32, #tpu.memory_space<vmem>>, vector<16x100xf32>,
    return
  }
  func.func @transform_0(%arg0: i32) -> (i32, i32) {
    %c0_i32 = arith.constant 0 : i32
    %c0_i32_0 = arith.constant 0 : i32
    return %arg0, %c0_i32 : i32, i32
  }
  func.func @transform_1(%arg0: i32) -> (i32, i32) {
    %c0_i32 = arith.constant 0 : i32
    %c0_i32_0 = arith.constant 0 : i32
    return %arg0, %c0_i32 : i32, i32
  }
  func.func @transform_2(%arg0: i32) -> (i32, i32) {
    %c0_i32 = arith.constant 0 : i32
    %c0_i32_0 = arith.constant 0 : i32
    %c0_i32_1 = arith.constant 0 : i32
    return %c0_i32, %c0_i32_0 : i32, i32
  }
  func.func @transform_3(%arg0: i32) -> (i32, i32) {
    %c0_i32 = arith.constant 0 : i32
    %c0_i32_0 = arith.constant 0 : i32
    %c0_i32_1 = arith.constant 0 : i32
    return %c0_i32, %c0_i32_0 : i32, i32
  }
  func.func @transform_4(%arg0: i32) -> (i32, i32) {
    %c0_i32 = arith.constant 0 : i32
    %c0_i32_0 = arith.constant 0 : i32
    %c0_i32_1 = arith.constant 0 : i32
    return %c0_i32, %c0_i32_0 : i32, i32
  }
  func.func @transform_5(%arg0: i32) -> (i32, i32) {
    %c0_i32 = arith.constant 0 : i32
    %c0_i32_0 = arith.constant 0 : i32
    %c0_i32_1 = arith.constant 0 : i32
    return %c0_i32, %c0_i32_0 : i32, i32
  }
  func.func @transform_6(%arg0: i32) -> (i32, i32) {
    %c0_i32 = arith.constant 0 : i32
    %c0_i32_0 = arith.constant 0 : i32
    %c0_i32_1 = arith.constant 0 : i32
    return %c0_i32, %c0_i32_0 : i32, i32
  }
  func.func @transform_7(%arg0: i32) -> (i32, i32) {
    %c0_i32 = arith.constant 0 : i32
    %c0_i32_0 = arith.constant 0 : i32
    return %arg0, %c0_i32 : i32, i32
  }
}

</mosaic_0001>

<llo_original>
// kernel: tpu_custom_call.1
$region0: #{tpu_custom_call.1}
  #allocation0 [shape = 'u32[]', space=smem, size = 0x4, offset = 0x4, fixed_abs, tag = 'smem constant byte address 0x4 - core index']
  #allocation1 [shape = 'u32[144,128]{1,0:T(1,128)}', space=vmem, size = 0x12000, scoped, tag = 'internal scratch']
  %s0 = inlined_call_operand.hbm [shape: bf16[16,128], index: 0, kind: input, shape index: {}]
  %s1 = inlined_call_operand.hbm [shape: bf16[16,128], index: 1, kind: input, shape index: {}]
  %s2 = inlined_call_operand.hbm [shape: bf16[256,256], index: 2, kind: input, shape index: {}]
  %s3 = inlined_call_operand.hbm [shape: bf16[256,128], index: 3, kind: input, shape index: {}]
  %s4 = inlined_call_operand.hbm [shape: bf16[128,128], index: 4, kind: input, shape index: {}]
  %s5 = inlined_call_operand.hbm [shape: bf16[128,128], index: 5, kind: input, shape index: {}]
  %s6 = inlined_call_operand.hbm [shape: f32[8,256], index: 6, kind: input, shape index: {}]
  %s7 = inlined_call_operand.hbm [shape: f32[16,100], index: 7, kind: output, shape index: {}]
  %s8 = sld [smem:[#allocation0]]
  $region66: #{tpu_custom_call.1} parent=0
    _
  %s10 = ssub.s32 1, %s8
  %s11 = scalar_select 0, %s10, %s8
  $region1: #{tpu_custom_call.1} parent=0
    #allocation2 [shape = 'u8[4096]{0}', space=vmem, size = 0x1000, scoped, tag = 'input window, operand 0, single buffered']
    #allocation3 [shape = 's32[1]{0}', space=sflag, size = 0x4, scoped, tag = 'scoped memory for tpu_custom_call.1']
    #allocation4 [shape = 's32[1]{0}', space=sflag, size = 0x4, scoped, tag = 'scoped memory for tpu_custom_call.1']
    #allocation5 [shape = 'u8[4096]{0}', space=vmem, size = 0x1000, scoped, tag = 'input window, operand 1, single buffered']
    #allocation6 [shape = 's32[1]{0}', space=sflag, size = 0x4, scoped, tag = 'scoped memory for tpu_custom_call.1']
    #allocation7 [shape = 'u8[131072]{0}', space=vmem, size = 0x20000, scoped, tag = 'input window, operand 2, single buffered']
    #allocation8 [shape = 'u8[65536]{0}', space=vmem, size = 0x10000, scoped, tag = 'input window, operand 3, single buffered']
    #allocation9 [shape = 's32[1]{0}', space=sflag, size = 0x4, scoped, tag = 'scoped memory for tpu_custom_call.1']
    #allocation10 [shape = 'u8[32768]{0}', space=vmem, size = 0x8000, scoped, tag = 'input window, operand 4, single buffered']
    #allocation11 [shape = 'u8[32768]{0}', space=vmem, size = 0x8000, scoped, tag = 'input window, operand 5, single buffered']
    #allocation12 [shape = 's32[1]{0}', space=sflag, size = 0x4, scoped, tag = 'scoped memory for tpu_custom_call.1']
    #allocation13 [shape = 'u8[8192]{0}', space=vmem, size = 0x2000, scoped, tag = 'input window, operand 6, single buffered']
    #allocation14 [shape = 'u8[8192]{0}', space=vmem, size = 0x2000, scoped, tag = 'output window, operand 0, single buffered']
    %12 = vsyncpa [#allocation3], 0
    %13 = vsyncpa [#allocation6], 0
    %14 = vsyncpa [#allocation9], 0
    %15 = vsyncpa [#allocation12], 0
    %16 = vsyncpa [#allocation4], 0
    // Predicated region
    $region2: #{tpu_custom_call.1} parent=1 // pred_check
      _
    $region3: #{tpu_custom_call.1} parent=1 // pred_check_branch
      %18 = sbr.rel (0) target = $region5
    $region4: #{tpu_custom_call.1} parent=1 // pred_region
      %s20 = ssub.s32 128, 128
      %21 = vsyncadd [#allocation3], %s20
      %s22 = sshll.u32 [#allocation2], 4
      %s23 = int_to_ptr.vmem [resolvable:$true] %s22
      %28 = dma.hbm_to_vmem [thread:$0]  %s0, 128, %s23, [#allocation3], 64, 64, 4
    $region5: #{tpu_custom_call.1} parent=1 // pred_fallthru
      _
    // Predicated region
    $region6: #{tpu_custom_call.1} parent=1 // pred_check
      _
    $region7: #{tpu_custom_call.1} parent=1 // pred_check_branch
      %30 = sbr.rel (0) target = $region9
    $region8: #{tpu_custom_call.1} parent=1 // pred_region
      %s32 = ssub.s32 128, 128
      %33 = vsyncadd [#allocation6], %s32
      %s34 = sshll.u32 [#allocation5], 4
      %s35 = int_to_ptr.vmem [resolvable:$true] %s34
      %40 = dma.hbm_to_vmem [thread:$0]  %s1, 128, %s35, [#allocation6], 64, 64, 4
    $region9: #{tpu_custom_call.1} parent=1 // pred_fallthru
      _
    // Predicated region
    $region10: #{tpu_custom_call.1} parent=1 // pred_check
      _
    $region11: #{tpu_custom_call.1} parent=1 // pred_check_branch
      %42 = sbr.rel (0) target = $region13
    $region12: #{tpu_custom_call.1} parent=1 // pred_region
      %s44 = ssub.s32 4096, 4096
      %45 = vsyncadd [#allocation6], %s44
      %s46 = sshll.u32 [#allocation7], 4
      %s47 = int_to_ptr.vmem [resolvable:$true] %s46
      %52 = dma.hbm_to_vmem [thread:$0]  %s2, 4096, %s47, [#allocation6], 128, 128, 8
    $region13: #{tpu_custom_call.1} parent=1 // pred_fallthru
      _
    // Predicated region
    $region14: #{tpu_custom_call.1} parent=1 // pred_check
      _
    $region15: #{tpu_custom_call.1} parent=1 // pred_check_branch
      %54 = sbr.rel (0) target = $region17
    $region16: #{tpu_custom_call.1} parent=1 // pred_region
      %s56 = ssub.s32 2048, 2048
      %57 = vsyncadd [#allocation9], %s56
      %s58 = sshll.u32 [#allocation8], 4
      %s59 = int_to_ptr.vmem [resolvable:$true] %s58
      %64 = dma.hbm_to_vmem [thread:$0]  %s3, 2048, %s59, [#allocation9], 64, 64, 4
    $region17: #{tpu_custom_call.1} parent=1 // pred_fallthru
      _
    // Predicated region
    $region18: #{tpu_custom_call.1} parent=1 // pred_check
      _
    $region19: #{tpu_custom_call.1} parent=1 // pred_check_branch
      %66 = sbr.rel (0) target = $region21
    $region20: #{tpu_custom_call.1} parent=1 // pred_region
      %s68 = ssub.s32 1024, 1024
      %69 = vsyncadd [#allocation9], %s68
      %s70 = sshll.u32 [#allocation10], 4
      %s71 = int_to_ptr.vmem [resolvable:$true] %s70
      %76 = dma.hbm_to_vmem [thread:$0]  %s4, 1024, %s71, [#allocation9], 64, 64, 4
    $region21: #{tpu_custom_call.1} parent=1 // pred_fallthru
      _
    // Predicated region
    $region22: #{tpu_custom_call.1} parent=1 // pred_check
      _
    $region23: #{tpu_custom_call.1} parent=1 // pred_check_branch
      %78 = sbr.rel (0) target = $region25
    $region24: #{tpu_custom_call.1} parent=1 // pred_region
      %s80 = ssub.s32 1024, 1024
      %81 = vsyncadd [#allocation12], %s80
      %s82 = sshll.u32 [#allocation11], 4
      %s83 = int_to_ptr.vmem [resolvable:$true] %s82
      %88 = dma.hbm_to_vmem [thread:$0]  %s5, 1024, %s83, [#allocation12], 64, 64, 4
    $region25: #{tpu_custom_call.1} parent=1 // pred_fallthru
      _
    // Predicated region
    $region26: #{tpu_custom_call.1} parent=1 // pred_check
      _
    $region27: #{tpu_custom_call.1} parent=1 // pred_check_branch
      %90 = sbr.rel (0) target = $region29
    $region28: #{tpu_custom_call.1} parent=1 // pred_region
      %s92 = ssub.s32 256, 256
      %93 = vsyncadd [#allocation12], %s92
      %s95 = sshll.u32 [#allocation13], 4
      %s96 = int_to_ptr.vmem [resolvable:$true] %s95
      %98 = dma.hbm_to_vmem [thread:$0]  %s6, 256, %s96, [#allocation12]
    $region29: #{tpu_custom_call.1} parent=1 // pred_fallthru
      _
    // Predicated region
    $region30: #{tpu_custom_call.1} parent=1 // pred_check
      _
    $region31: #{tpu_custom_call.1} parent=1 // pred_check_branch
      %100 = sbr.rel (0) target = $region33
    $region32: #{tpu_custom_call.1} parent=1 // pred_region
      %101 = dma.done [#allocation3], 128
    $region33: #{tpu_custom_call.1} parent=1 // pred_fallthru
      _
    // Predicated region
    $region34: #{tpu_custom_call.1} parent=1 // pred_check
      _
    $region35: #{tpu_custom_call.1} parent=1 // pred_check_branch
      %103 = sbr.rel (0) target = $region37
    $region36: #{tpu_custom_call.1} parent=1 // pred_region
      %104 = dma.done [#allocation6], 128
    $region37: #{tpu_custom_call.1} parent=1 // pred_fallthru
      _
    // Predicated region
    $region38: #{tpu_custom_call.1} parent=1 // pred_check
      _
    $region39: #{tpu_custom_call.1} parent=1 // pred_check_branch
      %106 = sbr.rel (0) target = $region41
    $region40: #{tpu_custom_call.1} parent=1 // pred_region
      %107 = dma.done [#allocation6], 4096
    $region41: #{tpu_custom_call.1} parent=1 // pred_fallthru
      _
    // Predicated region
    $region42: #{tpu_custom_call.1} parent=1 // pred_check
      _
    $region43: #{tpu_custom_call.1} parent=1 // pred_check_branch
      %109 = sbr.rel (0) target = $region45
    $region44: #{tpu_custom_call.1} parent=1 // pred_region
      %110 = dma.done [#allocation9], 2048
    $region45: #{tpu_custom_call.1} parent=1 // pred_fallthru
      _
    // Predicated region
    $region46: #{tpu_custom_call.1} parent=1 // pred_check
      _
    $region47: #{tpu_custom_call.1} parent=1 // pred_check_branch
      %112 = sbr.rel (0) target = $region49
    $region48: #{tpu_custom_call.1} parent=1 // pred_region
      %113 = dma.done [#allocation9], 1024
    $region49: #{tpu_custom_call.1} parent=1 // pred_fallthru
      _
    // Predicated region
    $region50: #{tpu_custom_call.1} parent=1 // pred_check
      _
    $region51: #{tpu_custom_call.1} parent=1 // pred_check_branch
      %115 = sbr.rel (0) target = $region53
    $region52: #{tpu_custom_call.1} parent=1 // pred_region
      %116 = dma.done [#allocation12], 1024
    $region53: #{tpu_custom_call.1} parent=1 // pred_fallthru
      _
    // Predicated region
    $region54: #{tpu_custom_call.1} parent=1 // pred_check
      _
    $region55: #{tpu_custom_call.1} parent=1 // pred_check_branch
      %118 = sbr.rel (0) target = $region57
    $region56: #{tpu_custom_call.1} parent=1 // pred_region
      %119 = dma.done [#allocation12], 256
    $region57: #{tpu_custom_call.1} parent=1 // pred_fallthru
      _
    %v121 = vld [vmem:[#allocation13] sm:$0xff]
    %v122 = vld [vmem:[#allocation13 + $0x8] sm:$0xff]
    %v123 = vld [vmem:[#allocation2] sm:$0xf]
    %v124 = vld [vmem:[#allocation2 + $0x4] sm:$0xf]
    %v125 = vunpack.c.l.bf16 %v123
    %v126 = vunpack.c.l.bf16 %v124
    %v127 = vlaneseq
    %v128 = vshrl.u32 %v127, 7
    %v129 = vsub.s32 0, %v128
    %v130 = vrot.slane %v121, %v129
    %v131 = vmul.f32 %v125, %v130
    %v132 = vmul.f32 %v126, %v130
    %v133 = vlaneseq
    %v134 = vshrl.u32 %v133, 7
    %v135 = vsub.s32 1, %v134
    %v136 = vrot.slane %v121, %v135
    %v137 = vadd.f32 %v131, %v136
    %v138 = vadd.f32 %v132, %v136
    %v139 = vmax.f32 %v137, 0.0
    %v140 = vmax.f32 %v138, 0.0
    %v141 = vld [vmem:[#allocation5] sm:$0xf]
    %v142 = vld [vmem:[#allocation5 + $0x4] sm:$0xf]
    %v143 = vunpack.c.l.bf16 %v141
    %v144 = vunpack.c.l.bf16 %v142
    %v145 = vlaneseq
    %v146 = vshrl.u32 %v145, 7
    %v147 = vsub.s32 0, %v146
    %v148 = vrot.slane %v122, %v147
    %v149 = vmul.f32 %v143, %v148
    %v150 = vmul.f32 %v144, %v148
    %v151 = vlaneseq
    %v152 = vshrl.u32 %v151, 7
    %v153 = vsub.s32 1, %v152
    %v154 = vrot.slane %v122, %v153
    %v155 = vadd.f32 %v149, %v154
    %v156 = vadd.f32 %v150, %v154
    %v157 = vmax.f32 %v155, 0.0
    %v158 = vmax.f32 %v156, 0.0
    %v159 = vpack.c.bf16 %v140, %v139
    %v160 = vpack.c.bf16 %v158, %v157
    %v161 = vld [vmem:[#allocation7] sm:$0xff]
    %v162 = vld [vmem:[#allocation7 + $0x8] sm:$0xff]
    %v163 = vld [vmem:[#allocation7 + $0x10] sm:$0xff]
    %v164 = vld [vmem:[#allocation7 + $0x18] sm:$0xff]
    %v165 = vld [vmem:[#allocation7 + $0x20] sm:$0xff]
    %v166 = vld [vmem:[#allocation7 + $0x28] sm:$0xff]
    %v167 = vld [vmem:[#allocation7 + $0x30] sm:$0xff]
    %v168 = vld [vmem:[#allocation7 + $0x38] sm:$0xff]
    %v169 = vld [vmem:[#allocation7 + $0x40] sm:$0xff]
    %v170 = vld [vmem:[#allocation7 + $0x48] sm:$0xff]
    %v171 = vld [vmem:[#allocation7 + $0x50] sm:$0xff]
    %v172 = vld [vmem:[#allocation7 + $0x58] sm:$0xff]
    %v173 = vld [vmem:[#allocation7 + $0x60] sm:$0xff]
    %v174 = vld [vmem:[#allocation7 + $0x68] sm:$0xff]
    %v175 = vld [vmem:[#allocation7 + $0x70] sm:$0xff]
    %v176 = vld [vmem:[#allocation7 + $0x78] sm:$0xff]
    %v177 = vld [vmem:[#allocation7 + $0x80] sm:$0xff]
    %v178 = vld [vmem:[#allocation7 + $0x88] sm:$0xff]
    %v179 = vld [vmem:[#allocation7 + $0x90] sm:$0xff]
    %v180 = vld [vmem:[#allocation7 + $0x98] sm:$0xff]
    %v181 = vld [vmem:[#allocation7 + $0xa0] sm:$0xff]
    %v182 = vld [vmem:[#allocation7 + $0xa8] sm:$0xff]
    %v183 = vld [vmem:[#allocation7 + $0xb0] sm:$0xff]
    %v184 = vld [vmem:[#allocation7 + $0xb8] sm:$0xff]
    %v185 = vld [vmem:[#allocation7 + $0xc0] sm:$0xff]
    %v186 = vld [vmem:[#allocation7 + $0xc8] sm:$0xff]
    %v187 = vld [vmem:[#allocation7 + $0xd0] sm:$0xff]
    %v188 = vld [vmem:[#allocation7 + $0xd8] sm:$0xff]
    %v189 = vld [vmem:[#allocation7 + $0xe0] sm:$0xff]
    %v190 = vld [vmem:[#allocation7 + $0xe8] sm:$0xff]
    %v191 = vld [vmem:[#allocation7 + $0xf0] sm:$0xff]
    %v192 = vld [vmem:[#allocation7 + $0xf8] sm:$0xff]
    %v193 = vlaneseq
    %v194 = vshrl.u32 %v193, 7
    %v195 = vsub.s32 2, %v194
    %v196 = vrot.slane %v121, %v195
    %v197 = vlaneseq
    %v198 = vshrl.u32 %v197, 7
    %v199 = vsub.s32 2, %v198
    %v200 = vrot.slane %v122, %v199
    %v233 = vunpack.c.l.b16 %v161
    %v234 = vunpack.c.h.b16 %v161
    %v235 = vunpack.c.l.b16 %v162
    %v236 = vunpack.c.h.b16 %v162
    %v237 = vunpack.c.l.b16 %v163
    %v238 = vunpack.c.h.b16 %v163
    %v239 = vunpack.c.l.b16 %v164
    %v240 = vunpack.c.h.b16 %v164
    %v241 = vunpack.c.l.b16 %v165
    %v242 = vunpack.c.h.b16 %v165
    %v243 = vunpack.c.l.b16 %v166
    %v244 = vunpack.c.h.b16 %v166
    %v245 = vunpack.c.l.b16 %v167
    %v246 = vunpack.c.h.b16 %v167
    %v247 = vunpack.c.l.b16 %v168
    %v248 = vunpack.c.h.b16 %v168
    %v249 = vunpack.c.l.b16 %v169
    %v250 = vunpack.c.h.b16 %v169
    %v251 = vunpack.c.l.b16 %v170
    %v252 = vunpack.c.h.b16 %v170
    %v253 = vunpack.c.l.b16 %v171
    %v254 = vunpack.c.h.b16 %v171
    %v255 = vunpack.c.l.b16 %v172
    %v256 = vunpack.c.h.b16 %v172
    %v257 = vunpack.c.l.b16 %v173
    %v258 = vunpack.c.h.b16 %v173
    %v259 = vunpack.c.l.b16 %v174
    %v260 = vunpack.c.h.b16 %v174
    %v261 = vunpack.c.l.b16 %v175
    %v262 = vunpack.c.h.b16 %v175
    %v263 = vunpack.c.l.b16 %v176
    %v264 = vunpack.c.h.b16 %v176
    %v265 = vunpack.c.l.b16 %v177
    %v266 = vunpack.c.h.b16 %v177
    %v267 = vunpack.c.l.b16 %v178
    %v268 = vunpack.c.h.b16 %v178
    %v269 = vunpack.c.l.b16 %v179
    %v270 = vunpack.c.h.b16 %v179
    %v271 = vunpack.c.l.b16 %v180
    %v272 = vunpack.c.h.b16 %v180
    %v273 = vunpack.c.l.b16 %v181
    %v274 = vunpack.c.h.b16 %v181
    %v275 = vunpack.c.l.b16 %v182
    %v276 = vunpack.c.h.b16 %v182
    %v277 = vunpack.c.l.b16 %v183
    %v278 = vunpack.c.h.b16 %v183
    %v279 = vunpack.c.l.b16 %v184
    %v280 = vunpack.c.h.b16 %v184
    %v281 = vunpack.c.l.b16 %v185
    %v282 = vunpack.c.h.b16 %v185
    %v283 = vunpack.c.l.b16 %v186
    %v284 = vunpack.c.h.b16 %v186
    %v285 = vunpack.c.l.b16 %v187
    %v286 = vunpack.c.h.b16 %v187
    %v287 = vunpack.c.l.b16 %v188
    %v288 = vunpack.c.h.b16 %v188
    %v289 = vunpack.c.l.b16 %v189
    %v290 = vunpack.c.h.b16 %v189
    %v291 = vunpack.c.l.b16 %v190
    %v292 = vunpack.c.h.b16 %v190
    %v293 = vunpack.c.l.b16 %v191
    %v294 = vunpack.c.h.b16 %v191
    %v295 = vunpack.c.l.b16 %v192
    %v296 = vunpack.c.h.b16 %v192
    %v297 = vpack.c.b16 %v235, %v233
    %v298 = vpack.c.b16 %v236, %v234
    %v299 = vpack.c.b16 %v239, %v237
    %v300 = vpack.c.b16 %v240, %v238
    %v301 = vpack.c.b16 %v243, %v241
    %v302 = vpack.c.b16 %v244, %v242
    %v303 = vpack.c.b16 %v247, %v245
    %v304 = vpack.c.b16 %v248, %v246
    %v305 = vpack.c.b16 %v251, %v249
    %v306 = vpack.c.b16 %v252, %v250
    %v307 = vpack.c.b16 %v255, %v253
    %v308 = vpack.c.b16 %v256, %v254
    %v309 = vpack.c.b16 %v259, %v257
    %v310 = vpack.c.b16 %v260, %v258
    %v311 = vpack.c.b16 %v263, %v261
    %v312 = vpack.c.b16 %v264, %v262
    %v313 = vpack.c.b16 %v267, %v265
    %v314 = vpack.c.b16 %v268, %v266
    %v315 = vpack.c.b16 %v271, %v269
    %v316 = vpack.c.b16 %v272, %v270
    %v317 = vpack.c.b16 %v275, %v273
    %v318 = vpack.c.b16 %v276, %v274
    %v319 = vpack.c.b16 %v279, %v277
    %v320 = vpack.c.b16 %v280, %v278
    %v321 = vpack.c.b16 %v283, %v281
    %v322 = vpack.c.b16 %v284, %v282
    %v323 = vpack.c.b16 %v287, %v285
    %v324 = vpack.c.b16 %v288, %v286
    %v325 = vpack.c.b16 %v291, %v289
    %v326 = vpack.c.b16 %v292, %v290
    %v327 = vpack.c.b16 %v295, %v293
    %v328 = vpack.c.b16 %v296, %v294
    %361 = vmatprep.subr.bf16.mxu0 %v312
    %362 = vmatpush1.bf16.msra.mxu0 %v311
    %363 = vmatprep.subr.bf16.mxu0 %v310
    %364 = vmatpush1.bf16.msra.mxu0 %v309
    %365 = vmatprep.subr.bf16.mxu0 %v308
    %366 = vmatpush1.bf16.msra.mxu0 %v307
    %367 = vmatprep.subr.bf16.mxu0 %v306
    %368 = vmatpush1.bf16.msra.mxu0 %v305
    %369 = vmatprep.subr.bf16.mxu0 %v304
    %370 = vmatpush1.bf16.msra.mxu0 %v303
    %371 = vmatprep.subr.bf16.mxu0 %v302
    %372 = vmatpush1.bf16.msra.mxu0 %v301
    %373 = vmatprep.subr.bf16.mxu0 %v300
    %374 = vmatpush1.bf16.msra.mxu0 %v299
    %375 = vmatprep.subr.bf16.mxu0 %v298
    %376 = vmatpush1.bf16.msra.mxu0 %v297
    %377 = vmatprep.subr.bf16.mxu0 %v328
    %378 = vmatpush2.bf16.msra.mxu0 %v327
    %379 = vmatprep.subr.bf16.mxu0 %v326
    %380 = vmatpush2.bf16.msra.mxu0 %v325
    %381 = vmatprep.subr.bf16.mxu0 %v324
    %382 = vmatpush2.bf16.msra.mxu0 %v323
    %383 = vmatprep.subr.bf16.mxu0 %v322
    %384 = vmatpush2.bf16.msra.mxu0 %v321
    %385 = vmatprep.subr.bf16.mxu0 %v320
    %386 = vmatpush2.bf16.msra.mxu0 %v319
    %387 = vmatprep.subr.bf16.mxu0 %v318
    %388 = vmatpush2.bf16.msra.mxu0 %v317
    %389 = vmatprep.subr.bf16.mxu0 %v316
    %390 = vmatpush2.bf16.msra.mxu0 %v315
    %391 = vmatprep.subr.bf16.mxu0 %v314
    %392 = vmatpush2.bf16.msra.mxu0 %v313
    %393 = vmatprep.mubr.bf16.mxu0 %v160
    %394 = vmatmul.mubr.bf16.gmra.mxu0 %v159
    %v395 = vpop.f32.mrf.mxu0
    %v396 = vadd.f32 %v196, %v395
    %v397 = vpop.f32.mrf.mxu0
    %v398 = vadd.f32 %v200, %v397
    %v399 = vpop.f32.mrf.mxu0
    %v400 = vadd.f32 %v196, %v399
    %v401 = vpop.f32.mrf.mxu0
    %v402 = vadd.f32 %v200, %v401
    %403 = vdwg.mxu0
    %v404 = vmax.f32 %v396, 0.0
    %v405 = vmax.f32 %v398, 0.0
    %v406 = vmax.f32 %v400, 0.0
    %v407 = vmax.f32 %v402, 0.0
    %v408 = vpack.c.bf16 %v406, %v404
    %v409 = vpack.c.bf16 %v407, %v405
    %v410 = vld [vmem:[#allocation8] sm:$0xf]
    %v411 = vld [vmem:[#allocation8 + $0x4] sm:$0xf]
    %v412 = vld [vmem:[#allocation8 + $0x8] sm:$0xf]
    %v413 = vld [vmem:[#allocation8 + $0xc] sm:$0xf]
    %v414 = vld [vmem:[#allocation8 + $0x10] sm:$0xf]
    %v415 = vld [vmem:[#allocation8 + $0x14] sm:$0xf]
    %v416 = vld [vmem:[#allocation8 + $0x18] sm:$0xf]
    %v417 = vld [vmem:[#allocation8 + $0x1c] sm:$0xf]
    %v418 = vld [vmem:[#allocation8 + $0x20] sm:$0xf]
    %v419 = vld [vmem:[#allocation8 + $0x24] sm:$0xf]
    %v420 = vld [vmem:[#allocation8 + $0x28] sm:$0xf]
    %v421 = vld [vmem:[#allocation8 + $0x2c] sm:$0xf]
    %v422 = vld [vmem:[#allocation8 + $0x30] sm:$0xf]
    %v423 = vld [vmem:[#allocation8 + $0x34] sm:$0xf]
    %v424 = vld [vmem:[#allocation8 + $0x38] sm:$0xf]
    %v425 = vld [vmem:[#allocation8 + $0x3c] sm:$0xf]
    %v426 = vld [vmem:[#allocation8 + $0x40] sm:$0xf]
    %v427 = vld [vmem:[#allocation8 + $0x44] sm:$0xf]
    %v428 = vld [vmem:[#allocation8 + $0x48] sm:$0xf]
    %v429 = vld [vmem:[#allocation8 + $0x4c] sm:$0xf]
    %v430 = vld [vmem:[#allocation8 + $0x50] sm:$0xf]
    %v431 = vld [vmem:[#allocation8 + $0x54] sm:$0xf]
    %v432 = vld [vmem:[#allocation8 + $0x58] sm:$0xf]
    %v433 = vld [vmem:[#allocation8 + $0x5c] sm:$0xf]
    %v434 = vld [vmem:[#allocation8 + $0x60] sm:$0xf]
    %v435 = vld [vmem:[#allocation8 + $0x64] sm:$0xf]
    %v436 = vld [vmem:[#allocation8 + $0x68] sm:$0xf]
    %v437 = vld [vmem:[#allocation8 + $0x6c] sm:$0xf]
    %v438 = vld [vmem:[#allocation8 + $0x70] sm:$0xf]
    %v439 = vld [vmem:[#allocation8 + $0x74] sm:$0xf]
    %v440 = vld [vmem:[#allocation8 + $0x78] sm:$0xf]
    %v441 = vld [vmem:[#allocation8 + $0x7c] sm:$0xf]
    %v442 = vlaneseq
    %v443 = vshrl.u32 %v442, 7
    %v444 = vsub.s32 3, %v443
    %v445 = vrot.slane %v121, %v444
    %v478 = vunpack.c.l.b16 %v410
    %v479 = vunpack.c.l.b16 %v411
    %v480 = vunpack.c.l.b16 %v412
    %v481 = vunpack.c.l.b16 %v413
    %v482 = vunpack.c.l.b16 %v414
    %v483 = vunpack.c.l.b16 %v415
    %v484 = vunpack.c.l.b16 %v416
    %v485 = vunpack.c.l.b16 %v417
    %v486 = vunpack.c.l.b16 %v418
    %v487 = vunpack.c.l.b16 %v419
    %v488 = vunpack.c.l.b16 %v420
    %v489 = vunpack.c.l.b16 %v421
    %v490 = vunpack.c.l.b16 %v422
    %v491 = vunpack.c.l.b16 %v423
    %v492 = vunpack.c.l.b16 %v424
    %v493 = vunpack.c.l.b16 %v425
    %v494 = vunpack.c.l.b16 %v426
    %v495 = vunpack.c.l.b16 %v427
    %v496 = vunpack.c.l.b16 %v428
    %v497 = vunpack.c.l.b16 %v429
    %v498 = vunpack.c.l.b16 %v430
    %v499 = vunpack.c.l.b16 %v431
    %v500 = vunpack.c.l.b16 %v432
    %v501 = vunpack.c.l.b16 %v433
    %v502 = vunpack.c.l.b16 %v434
    %v503 = vunpack.c.l.b16 %v435
    %v504 = vunpack.c.l.b16 %v436
    %v505 = vunpack.c.l.b16 %v437
    %v506 = vunpack.c.l.b16 %v438
    %v507 = vunpack.c.l.b16 %v439
    %v508 = vunpack.c.l.b16 %v440
    %v509 = vunpack.c.l.b16 %v441
    %v510 = vpack.c.b16 %v479, %v478
    %v511 = vpack.c.b16 %v481, %v480
    %v512 = vpack.c.b16 %v483, %v482
    %v513 = vpack.c.b16 %v485, %v484
    %v514 = vpack.c.b16 %v487, %v486
    %v515 = vpack.c.b16 %v489, %v488
    %v516 = vpack.c.b16 %v491, %v490
    %v517 = vpack.c.b16 %v493, %v492
    %v518 = vpack.c.b16 %v495, %v494
    %v519 = vpack.c.b16 %v497, %v496
    %v520 = vpack.c.b16 %v499, %v498
    %v521 = vpack.c.b16 %v501, %v500
    %v522 = vpack.c.b16 %v503, %v502
    %v523 = vpack.c.b16 %v505, %v504
    %v524 = vpack.c.b16 %v507, %v506
    %v525 = vpack.c.b16 %v509, %v508
    %542 = vmatprep.subr.bf16.mxu0 0
    %543 = vmatpush1.bf16.msra.mxu0 %v517
    %544 = vmatprep.subr.bf16.mxu0 0
    %545 = vmatpush1.bf16.msra.mxu0 %v516
    %546 = vmatprep.subr.bf16.mxu0 0
    %547 = vmatpush1.bf16.msra.mxu0 %v515
    %548 = vmatprep.subr.bf16.mxu0 0
    %549 = vmatpush1.bf16.msra.mxu0 %v514
    %550 = vmatprep.subr.bf16.mxu0 0
    %551 = vmatpush1.bf16.msra.mxu0 %v513
    %552 = vmatprep.subr.bf16.mxu0 0
    %553 = vmatpush1.bf16.msra.mxu0 %v512
    %554 = vmatprep.subr.bf16.mxu0 0
    %555 = vmatpush1.bf16.msra.mxu0 %v511
    %556 = vmatprep.subr.bf16.mxu0 0
    %557 = vmatpush1.bf16.msra.mxu0 %v510
    %558 = vmatprep.subr.bf16.mxu0 0
    %559 = vmatpush2.bf16.msra.mxu0 %v525
    %560 = vmatprep.subr.bf16.mxu0 0
    %561 = vmatpush2.bf16.msra.mxu0 %v524
    %562 = vmatprep.subr.bf16.mxu0 0
    %563 = vmatpush2.bf16.msra.mxu0 %v523
    %564 = vmatprep.subr.bf16.mxu0 0
    %565 = vmatpush2.bf16.msra.mxu0 %v522
    %566 = vmatprep.subr.bf16.mxu0 0
    %567 = vmatpush2.bf16.msra.mxu0 %v521
    %568 = vmatprep.subr.bf16.mxu0 0
    %569 = vmatpush2.bf16.msra.mxu0 %v520
    %570 = vmatprep.subr.bf16.mxu0 0
    %571 = vmatpush2.bf16.msra.mxu0 %v519
    %572 = vmatprep.subr.bf16.mxu0 0
    %573 = vmatpush2.bf16.msra.mxu0 %v518
    %574 = vmatprep.mubr.bf16.mxu0 %v409
    %575 = vmatmul.mubr.bf16.gmra.mxu0 %v408
    %v576 = vpop.f32.mrf.mxu0
    %v577 = vadd.f32 %v445, %v576
    %v578 = vpop.f32.mrf.mxu0
    %v579 = vpop.f32.mrf.mxu0
    %v580 = vadd.f32 %v445, %v579
    %v581 = vpop.f32.mrf.mxu0
    %582 = vdwg.mxu0
    %v583 = vmax.f32 %v577, 0.0
    %v584 = vmax.f32 %v580, 0.0
    %v585 = vpack.c.bf16 %v584, %v583
    %v586 = vld [vmem:[#allocation10] sm:$0xf]
    %v587 = vld [vmem:[#allocation10 + $0x4] sm:$0xf]
    %v588 = vld [vmem:[#allocation10 + $0x8] sm:$0xf]
    %v589 = vld [vmem:[#allocation10 + $0xc] sm:$0xf]
    %v590 = vld [vmem:[#allocation10 + $0x10] sm:$0xf]
    %v591 = vld [vmem:[#allocation10 + $0x14] sm:$0xf]
    %v592 = vld [vmem:[#allocation10 + $0x18] sm:$0xf]
    %v593 = vld [vmem:[#allocation10 + $0x1c] sm:$0xf]
    %v594 = vld [vmem:[#allocation10 + $0x20] sm:$0xf]
    %v595 = vld [vmem:[#allocation10 + $0x24] sm:$0xf]
    %v596 = vld [vmem:[#allocation10 + $0x28] sm:$0xf]
    %v597 = vld [vmem:[#allocation10 + $0x2c] sm:$0xf]
    %v598 = vld [vmem:[#allocation10 + $0x30] sm:$0xf]
    %v599 = vld [vmem:[#allocation10 + $0x34] sm:$0xf]
    %v600 = vld [vmem:[#allocation10 + $0x38] sm:$0xf]
    %v601 = vld [vmem:[#allocation10 + $0x3c] sm:$0xf]
    %v602 = vlaneseq
    %v603 = vshrl.u32 %v602, 7
    %v604 = vsub.s32 4, %v603
    %v605 = vrot.slane %v121, %v604
    %v622 = vunpack.c.l.b16 %v586
    %v623 = vunpack.c.l.b16 %v587
    %v624 = vunpack.c.l.b16 %v588
    %v625 = vunpack.c.l.b16 %v589
    %v626 = vunpack.c.l.b16 %v590
    %v627 = vunpack.c.l.b16 %v591
    %v628 = vunpack.c.l.b16 %v592
    %v629 = vunpack.c.l.b16 %v593
    %v630 = vunpack.c.l.b16 %v594
    %v631 = vunpack.c.l.b16 %v595
    %v632 = vunpack.c.l.b16 %v596
    %v633 = vunpack.c.l.b16 %v597
    %v634 = vunpack.c.l.b16 %v598
    %v635 = vunpack.c.l.b16 %v599
    %v636 = vunpack.c.l.b16 %v600
    %v637 = vunpack.c.l.b16 %v601
    %v638 = vpack.c.b16 %v623, %v622
    %v639 = vpack.c.b16 %v625, %v624
    %v640 = vpack.c.b16 %v627, %v626
    %v641 = vpack.c.b16 %v629, %v628
    %v642 = vpack.c.b16 %v631, %v630
    %v643 = vpack.c.b16 %v633, %v632
    %v644 = vpack.c.b16 %v635, %v634
    %v645 = vpack.c.b16 %v637, %v636
    %654 = vmatprep.subr.bf16.mxu0 0
    %655 = vmatpush1.bf16.msra.mxu0 %v645
    %656 = vmatprep.subr.bf16.mxu0 0
    %657 = vmatpush1.bf16.msra.mxu0 %v644
    %658 = vmatprep.subr.bf16.mxu0 0
    %659 = vmatpush1.bf16.msra.mxu0 %v643
    %660 = vmatprep.subr.bf16.mxu0 0
    %661 = vmatpush1.bf16.msra.mxu0 %v642
    %662 = vmatprep.subr.bf16.mxu0 0
    %663 = vmatpush1.bf16.msra.mxu0 %v641
    %664 = vmatprep.subr.bf16.mxu0 0
    %665 = vmatpush1.bf16.msra.mxu0 %v640
    %666 = vmatprep.subr.bf16.mxu0 0
    %667 = vmatpush1.bf16.msra.mxu0 %v639
    %668 = vmatprep.subr.bf16.mxu0 0
    %669 = vmatpush1.bf16.msra.mxu0 %v638
    %670 = vmatprep.subr.bf16.mxu0 0
    %671 = vmatpush2.bf16.msra.mxu0 0
    %672 = vmatprep.subr.bf16.mxu0 0
    %673 = vmatpush2.bf16.msra.mxu0 0
    %674 = vmatprep.subr.bf16.mxu0 0
    %675 = vmatpush2.bf16.msra.mxu0 0
    %676 = vmatprep.subr.bf16.mxu0 0
    %677 = vmatpush2.bf16.msra.mxu0 0
    %678 = vmatprep.subr.bf16.mxu0 0
    %679 = vmatpush2.bf16.msra.mxu0 0
    %680 = vmatprep.subr.bf16.mxu0 0
    %681 = vmatpush2.bf16.msra.mxu0 0
    %682 = vmatprep.subr.bf16.mxu0 0
    %683 = vmatpush2.bf16.msra.mxu0 0
    %684 = vmatprep.subr.bf16.mxu0 0
    %685 = vmatpush2.bf16.msra.mxu0 0
    %686 = vmatprep.mubr.bf16.mxu0 0
    %687 = vmatmul.mubr.bf16.gmra.mxu0 %v585
    %v688 = vpop.f32.mrf.mxu0
    %v689 = vadd.f32 %v605, %v688
    %v690 = vpop.f32.mrf.mxu0
    %v691 = vpop.f32.mrf.mxu0
    %v692 = vadd.f32 %v605, %v691
    %v693 = vpop.f32.mrf.mxu0
    %694 = vdwg.mxu0
    %v695 = vmax.f32 %v689, 0.0
    %v696 = vmax.f32 %v692, 0.0
    %v697 = vpack.c.bf16 %v696, %v695
    %v698 = vld [vmem:[#allocation11] sm:$0xf]
    %v699 = vld [vmem:[#allocation11 + $0x4] sm:$0xf]
    %v700 = vld [vmem:[#allocation11 + $0x8] sm:$0xf]
    %v701 = vld [vmem:[#allocation11 + $0xc] sm:$0xf]
    %v702 = vld [vmem:[#allocation11 + $0x10] sm:$0xf]
    %v703 = vld [vmem:[#allocation11 + $0x14] sm:$0xf]
    %v704 = vld [vmem:[#allocation11 + $0x18] sm:$0xf]
    %v705 = vld [vmem:[#allocation11 + $0x1c] sm:$0xf]
    %v706 = vld [vmem:[#allocation11 + $0x20] sm:$0xf]
    %v707 = vld [vmem:[#allocation11 + $0x24] sm:$0xf]
    %v708 = vld [vmem:[#allocation11 + $0x28] sm:$0xf]
    %v709 = vld [vmem:[#allocation11 + $0x2c] sm:$0xf]
    %v710 = vld [vmem:[#allocation11 + $0x30] sm:$0xf]
    %v711 = vld [vmem:[#allocation11 + $0x34] sm:$0xf]
    %v712 = vld [vmem:[#allocation11 + $0x38] sm:$0xf]
    %v713 = vld [vmem:[#allocation11 + $0x3c] sm:$0xf]
    %v714 = vlaneseq
    %v715 = vshrl.u32 %v714, 7
    %v716 = vsub.s32 5, %v715
    %v717 = vrot.slane %v121, %v716
    %v734 = vunpack.c.l.b16 %v698
    %v735 = vunpack.c.l.b16 %v699
    %v736 = vunpack.c.l.b16 %v700
    %v737 = vunpack.c.l.b16 %v701
    %v738 = vunpack.c.l.b16 %v702
    %v739 = vunpack.c.l.b16 %v703
    %v740 = vunpack.c.l.b16 %v704
    %v741 = vunpack.c.l.b16 %v705
    %v742 = vunpack.c.l.b16 %v706
    %v743 = vunpack.c.l.b16 %v707
    %v744 = vunpack.c.l.b16 %v708
    %v745 = vunpack.c.l.b16 %v709
    %v746 = vunpack.c.l.b16 %v710
    %v747 = vunpack.c.l.b16 %v711
    %v748 = vunpack.c.l.b16 %v712
    %v749 = vunpack.c.l.b16 %v713
    %v750 = vpack.c.b16 %v735, %v734
    %v751 = vpack.c.b16 %v737, %v736
    %v752 = vpack.c.b16 %v739, %v738
    %v753 = vpack.c.b16 %v741, %v740
    %v754 = vpack.c.b16 %v743, %v742
    %v755 = vpack.c.b16 %v745, %v744
    %v756 = vpack.c.b16 %v747, %v746
    %v757 = vpack.c.b16 %v749, %v748
    %766 = vmatprep.subr.bf16.mxu0 0
    %767 = vmatpush1.bf16.msra.mxu0 %v757
    %768 = vmatprep.subr.bf16.mxu0 0
    %769 = vmatpush1.bf16.msra.mxu0 %v756
    %770 = vmatprep.subr.bf16.mxu0 0
    %771 = vmatpush1.bf16.msra.mxu0 %v755
    %772 = vmatprep.subr.bf16.mxu0 0
    %773 = vmatpush1.bf16.msra.mxu0 %v754
    %774 = vmatprep.subr.bf16.mxu0 0
    %775 = vmatpush1.bf16.msra.mxu0 %v753
    %776 = vmatprep.subr.bf16.mxu0 0
    %777 = vmatpush1.bf16.msra.mxu0 %v752
    %778 = vmatprep.subr.bf16.mxu0 0
    %779 = vmatpush1.bf16.msra.mxu0 %v751
    %780 = vmatprep.subr.bf16.mxu0 0
    %781 = vmatpush1.bf16.msra.mxu0 %v750
    %782 = vmatprep.subr.bf16.mxu0 0
    %783 = vmatpush2.bf16.msra.mxu0 0
    %784 = vmatprep.subr.bf16.mxu0 0
    %785 = vmatpush2.bf16.msra.mxu0 0
    %786 = vmatprep.subr.bf16.mxu0 0
    %787 = vmatpush2.bf16.msra.mxu0 0
    %788 = vmatprep.subr.bf16.mxu0 0
    %789 = vmatpush2.bf16.msra.mxu0 0
    %790 = vmatprep.subr.bf16.mxu0 0
    %791 = vmatpush2.bf16.msra.mxu0 0
    %792 = vmatprep.subr.bf16.mxu0 0
    %793 = vmatpush2.bf16.msra.mxu0 0
    %794 = vmatprep.subr.bf16.mxu0 0
    %795 = vmatpush2.bf16.msra.mxu0 0
    %796 = vmatprep.subr.bf16.mxu0 0
    %797 = vmatpush2.bf16.msra.mxu0 0
    %798 = vmatprep.mubr.bf16.mxu0 0
    %799 = vmatmul.mubr.bf16.gmra.mxu0 %v697
    %v800 = vpop.f32.mrf.mxu0
    %v801 = vadd.f32 %v717, %v800
    %v802 = vpop.f32.mrf.mxu0
    %v803 = vpop.f32.mrf.mxu0
    %v804 = vadd.f32 %v717, %v803
    %v805 = vpop.f32.mrf.mxu0
    %806 = vdwg.mxu0
    %v807 = vlaneseq
    %v808 = vand.u32 %v807, 127
    %vm809 = vcmp.lt.s32.totalorder %v808, 100
    %v810 = vsel %vm809, %v801, -1e+30
    %v811 = vsel %vm809, %v804, -1e+30
    %812 = vmax.xlane.f32.xlu0 %v810
    %v813 = vpop.xlane.xlu0 %812
    %814 = vmax.xlane.f32.xlu0 %v811
    %v815 = vpop.xlane.xlu0 %814
    %v816 = vsub.f32 %v810, %v813
    %v817 = vsub.f32 %v811, %v815
    %v818 = vmul.f32 %v816, 1.442695
    %v819 = vpow.pop %v818
    %v820 = vmul.f32 %v817, 1.442695
    %v821 = vpow.pop %v820
    %822 = vadd.xlane.f32.xlu0 %v819
    %v823 = vpop.xlane.xlu0 %822
    %824 = vadd.xlane.f32.xlu0 %v821
    %v825 = vpop.xlane.xlu0 %824
    %v826 = vlog2.pop %v823
    %v827 = vmul.f32 %v826, 0.6931472
    %v828 = vlog2.pop %v825
    %v829 = vmul.f32 %v828, 0.6931472
    %v830 = vsub.f32 %v816, %v827
    %v831 = vsub.f32 %v817, %v829
    %vm832 = vcmask 818176
    %833 = vst.msk [vmem:[#allocation14] sm:$0xff] %vm832, %v830
    %834 = vst.msk [vmem:[#allocation14 + $0x8] sm:$0xff] %vm832, %v831
    // Predicated region
    $region58: #{tpu_custom_call.1} parent=1 // pred_check
      _
    $region59: #{tpu_custom_call.1} parent=1 // pred_check_branch
      %836 = sbr.rel (0) target = $region61
    $region60: #{tpu_custom_call.1} parent=1 // pred_region
      %s838 = ssub.s32 256, 256
      %839 = vsyncadd [#allocation4], %s838
      %s840 = sshll.u32 [#allocation14], 4
      %s841 = int_to_ptr.vmem [resolvable:$true] %s840
      %846 = dma.vmem_to_hbm [thread:$0]  %s841, 256, %s7, [#allocation4], 128, 128, 8
    $region61: #{tpu_custom_call.1} parent=1 // pred_fallthru
      _
    // Predicated region
    $region62: #{tpu_custom_call.1} parent=1 // pred_check
      _
    $region63: #{tpu_custom_call.1} parent=1 // pred_check_branch
      %848 = sbr.rel (0) target = $region65
    $region64: #{tpu_custom_call.1} parent=1 // pred_region
      %849 = dma.done [#allocation4], 256
    $region65: #{tpu_custom_call.1} parent=1 // pred_fallthru
      _
    %850 = vsyncpa [#allocation3], 1
    %851 = vsyncpa [#allocation6], 1
    %852 = vsyncpa [#allocation9], 1
    %853 = vsyncpa [#allocation12], 1
    %854 = vsyncpa [#allocation4], 1

</llo_original>
